<compile_context>
chip_gen: v6e
topology: v6e:2x2x1
jax: 0.10.0
libtpu: 0.0.40
codegen_flags: <defaults>
</compile_context>

<pallas_src>
import jax
import jax.numpy as jnp
from jax.experimental import pallas as pl
from jax.experimental.pallas import tpu as pltpu


def _conv_graph_kernel(x_ref, a_bd_ref, w_bd_ref, o_ref):
    # x_ref:    (N*(C_in[+1]), TV_pad)   batch+channels (and ones-row) stacked
    # a_bd_ref: (TV_pad, TV_pad)         block-diagonal adjacency
    # w_bd_ref: (N*C_out, N*(C_in[+1]))  block-diagonal weights (+bias column)
    # o_ref:    (N*C_out, TV_pad)
    # Graph contraction first (associativity): M = N*(C_in+1) is the small dim.
    z = jnp.dot(x_ref[...], a_bd_ref[...],
                preferred_element_type=jnp.float32)            # (N*(C_in+1), TV)
    # Channel mixing (1x1 conv) with bias folded into the weight matrix.
    out = jnp.dot(w_bd_ref[...], z,
                  preferred_element_type=jnp.float32)          # (N*C_out, TV)
    o_ref[...] = out.astype(o_ref.dtype)


def conv_temporal_graphical(x, A, weight, bias):
    """x: (N, C_in, T, V), A: (K, V, V) with K == T,
    weight: (C_out, C_in), bias: (C_out,) or None. Returns (out, A)."""
    N, C_in, T, V = x.shape
    K = A.shape[0]
    assert K == T, "einsum 'nctv,tvw->nctw' requires A.shape[0] == T"
    C_out = weight.shape[0]
    TV = T * V

    compute_dtype = jnp.float32
    A_f = A.astype(compute_dtype)
    W_f = weight.astype(compute_dtype)

    # Lane-dense padding: keep the trailing axis a multiple of 128 so stores
    # are full-width unmasked vst even when V is not a power of two.
    TV_pad = max(128, ((TV + 127) // 128) * 128)
    pad = TV_pad - TV

    # ---- operands built once in the wrapper (all tiny at these sizes) ------
    # Block-diagonal adjacency: A_bd[t*V+v, s*V+w] = A[t,v,w] * (t == s).
    # TODO(synk): for large T*V this is O((T*V)^2) f32 and should be replaced
    # by diagonal-block tiling (grid over T-chunks) before it exhausts VMEM.
    eye_T = jnp.eye(T, dtype=compute_dtype)
    A_bd = (A_f[:, :, None, :] * eye_T[:, None, :, None]).reshape(TV, TV)
    if pad:
        A_bd = jnp.pad(A_bd, ((0, pad), (0, pad)))

    # Fold the conv bias into the matmuls: append a ones "virtual channel" per
    # batch to x and a bias column to W, so
    #   out = W_bd @ (x_ext @ A_bd)
    # reproduces  sum_ci W[c,ci]*sum_v x*A  +  b[c]*sum_v A[t,v,w]  exactly.
    x_flat = x.astype(compute_dtype).reshape(N, C_in, TV)
    if bias is not None:
        ones_row = jnp.ones((N, 1, TV), dtype=compute_dtype)
        x_ext = jnp.concatenate([x_flat, ones_row], axis=1)     # (N, C_in+1, TV)
        W_ext = jnp.concatenate(
            [W_f, bias.astype(compute_dtype)[:, None]], axis=1)  # (C_out, C_in+1)
        C_in_eff = C_in + 1
    else:
        x_ext = x_flat
        W_ext = W_f
        C_in_eff = C_in
    x_ext = x_ext.reshape(N * C_in_eff, TV)
    if pad:
        x_ext = jnp.pad(x_ext, ((0, 0), (0, pad)))

    # Block-diagonal weights over the batch: one (N*C_out, N*C_in_eff) dot
    # replaces a per-batch loop / grid.
    eye_N = jnp.eye(N, dtype=compute_dtype)
    W_bd = (eye_N[:, None, :, None] * W_ext[None, :, None, :]).reshape(
        N * C_out, N * C_in_eff)

    # ---- single-step pallas_call (whole arrays resident in VMEM) ----------
    out_flat = pl.pallas_call(
        _conv_graph_kernel,
        out_shape=jax.ShapeDtypeStruct((N * C_out, TV_pad), x.dtype),
        in_specs=[
            pl.BlockSpec(memory_space=pltpu.MemorySpace.VMEM),
            pl.BlockSpec(memory_space=pltpu.MemorySpace.VMEM),
            pl.BlockSpec(memory_space=pltpu.MemorySpace.VMEM),
        ],
        out_specs=pl.BlockSpec(memory_space=pltpu.MemorySpace.VMEM),
    )(x_ext, A_bd, W_bd)

    out = out_flat[:, :TV].reshape(N, C_out, T, V)

    # TODO(synk): t_kernel_size > 1 / stride / padding / dilation paths of the
    # temporal nn.Conv2d are not implemented; defaults (1x1 conv) match the
    # module's default __init__.
    return out, A


def _reference(x, A, weight, bias):
    y = jnp.einsum('oc,nctv->notv', weight, x)
    if bias is not None:
        y = y + bias[None, :, None, None]
    return jnp.einsum('nctv,tvw->nctw', y, A)


if __name__ == "__main__":
    N, C_in, C_out, T, V = 2, 4, 32, 8, 16
    K = T  # spatial kernel size == sequence length (as used in social-stgcnn)

    key = jax.random.PRNGKey(0)
    k_x, k_a, k_w, k_b = jax.random.split(key, 4)
    x = jax.random.normal(k_x, (N, C_in, T, V), dtype=jnp.float32)
    A = jax.random.normal(k_a, (K, V, V), dtype=jnp.float32)
    weight = jax.random.normal(k_w, (C_out, C_in), dtype=jnp.float32) * 0.1
    bias = jax.random.normal(k_b, (C_out,), dtype=jnp.float32) * 0.1

    out, A_out = conv_temporal_graphical(x, A, weight, bias)
    out = jax.block_until_ready(out)

    ref = _reference(x, A, weight, bias)
    assert out.shape == (N, C_out, T, V)
    assert jnp.allclose(out, ref, atol=1e-4, rtol=1e-4)
    assert jnp.array_equal(A_out, A)

    # Also exercise the bias=None path (conv bias disabled).
    out_nb, _ = conv_temporal_graphical(x, A, weight, None)
    out_nb = jax.block_until_ready(out_nb)
    assert jnp.allclose(out_nb, _reference(x, A, weight, None),
                        atol=1e-4, rtol=1e-4)

    print("KERNEL_OK")
</pallas_src>

<mosaic_0001>
module attributes {stable_mosaic.version = 11 : i64} {
  func.func @_conv_graph_kernel(%arg0: memref<10x128xf32, #tpu.memory_space<vmem>>, %arg1: memref<128x128xf32, #tpu.memory_space<vmem>>, %arg2: memref<64x10xf32, #tpu.memory_space<vmem>>, %arg3: memref<64x128xf32, #tpu.memory_space<vmem>>) attributes {dimension_semantics = [], scalar_prefetch = 0 : i64, scratch_operands = 0 : i64, tpu.core_type = #tpu.core_type<tc>} {
    %c0 = arith.constant 0 : index
    %c0_0 = arith.constant 0 : index
    %0 = vector.load %arg0[%c0, %c0_0] : memref<10x128xf32, #tpu.memory_space<vmem>>, vector<10x128xf32>
    %c0_1 = arith.constant 0 : index
    %c0_2 = arith.constant 0 : index
    %1 = vector.load %arg1[%c0_1, %c0_2] : memref<128x128xf32, #tpu.memory_space<vmem>>, vector<128x128xf32>
    %cst = arith.constant dense<0.000000e+00> : vector<10x128xf32>
    %2 = tpu.matmul %0, %1, %cst {dimension_numbers = #tpu.dot_dimension_numbers<[1], [0], [0], [1], [0, 0, 1, 1], [], []>} : vector<10x128xf32>, vector<128x128xf32>, vector<10x128xf32> -> vector<10x128xf32>
    %c0_3 = arith.constant 0 : index
    %c0_4 = arith.constant 0 : index
    %3 = vector.load %arg2[%c0_3, %c0_4] : memref<64x10xf32, #tpu.memory_space<vmem>>, vector<64x10xf32>
    %cst_5 = arith.constant dense<0.000000e+00> : vector<64x128xf32>
    %4 = tpu.matmul %3, %2, %cst_5 {dimension_numbers = #tpu.dot_dimension_numbers<[1], [0], [0], [1], [0, 0, 1, 1], [], []>} : vector<64x10xf32>, vector<10x128xf32>, vector<64x128xf32> -> vector<64x128xf32>
    %c0_6 = arith.constant 0 : index
    %c0_7 = arith.constant 0 : index
    %5 = vector.load %arg3[%c0_6, %c0_7] : memref<64x128xf32, #tpu.memory_space<vmem>>, vector<64x128xf32>
    tpu.vector_store %arg3[%c0_6, %c0_7], %4 {strides = array<i32>} : memref<64x128xf32, #tpu.memory_space<vmem>>, vector<64x128xf32>,
    return
  }
}

</mosaic_0001>

<llo_original>
// kernel: tpu_custom_call.1
$region0: #{tpu_custom_call.1}
  #allocation0 [shape = 'u32[]', space=smem, size = 0x4, offset = 0x4, fixed_abs, tag = 'smem constant byte address 0x4 - core index']
  #allocation1 [shape = 'u32[144,128]{1,0:T(1,128)}', space=vmem, size = 0x12000, scoped, tag = 'internal scratch']
  %s0 = inlined_call_operand.vmem [shape: f32[10,128], index: 0, kind: input, shape index: {}]
  %s1 = inlined_call_operand.hbm [shape: f32[128,128], index: 1, kind: input, shape index: {}]
  %s2 = inlined_call_operand.vmem [shape: f32[64,10], index: 2, kind: input, shape index: {}]
  %s3 = inlined_call_operand.hbm [shape: f32[64,128], index: 3, kind: output, shape index: {}]
  %s4 = sld [smem:[#allocation0]]
  $region26: #{tpu_custom_call.1} parent=0
    _
  %s6 = ssub.s32 1, %s4
  %s7 = scalar_select 0, %s6, %s4
  $region1: #{tpu_custom_call.1} parent=0
    #allocation2 [shape = 'u8[65536]{0}', space=vmem, size = 0x10000, scoped, tag = 'input window, operand 1, single buffered']
    #allocation3 [shape = 's32[1]{0}', space=sflag, size = 0x4, scoped, tag = 'scoped memory for tpu_custom_call.1']
    #allocation4 [shape = 's32[1]{0}', space=sflag, size = 0x4, scoped, tag = 'scoped memory for tpu_custom_call.1']
    #allocation5 [shape = 'u8[32768]{0}', space=vmem, size = 0x8000, scoped, tag = 'output window, operand 0, single buffered']
    %8 = vsyncpa [#allocation3], 0
    %9 = vsyncpa [#allocation4], 0
    // Predicated region
    $region2: #{tpu_custom_call.1} parent=1 // pred_check
      _
    $region3: #{tpu_custom_call.1} parent=1 // pred_check_branch
      %11 = sbr.rel (0) target = $region5
    $region4: #{tpu_custom_call.1} parent=1 // pred_region
      _
    $region5: #{tpu_custom_call.1} parent=1 // pred_fallthru
      _
    // Predicated region
    $region6: #{tpu_custom_call.1} parent=1 // pred_check
      _
    $region7: #{tpu_custom_call.1} parent=1 // pred_check_branch
      %13 = sbr.rel (0) target = $region9
    $region8: #{tpu_custom_call.1} parent=1 // pred_region
      %s15 = ssub.s32 2048, 2048
      %16 = vsyncadd [#allocation3], %s15
      %s17 = sshll.u32 [#allocation2], 4
      %s18 = int_to_ptr.vmem [resolvable:$true] %s17
      %23 = dma.hbm_to_vmem [thread:$0]  %s1, 2048, %s18, [#allocation3], 128, 128, 8
    $region9: #{tpu_custom_call.1} parent=1 // pred_fallthru
      _
    // Predicated region
    $region10: #{tpu_custom_call.1} parent=1 // pred_check
      _
    $region11: #{tpu_custom_call.1} parent=1 // pred_check_branch
      %25 = sbr.rel (0) target = $region13
    $region12: #{tpu_custom_call.1} parent=1 // pred_region
      _
    $region13: #{tpu_custom_call.1} parent=1 // pred_fallthru
      _
    // Predicated region
    $region14: #{tpu_custom_call.1} parent=1 // pred_check
      _
    $region15: #{tpu_custom_call.1} parent=1 // pred_check_branch
      %27 = sbr.rel (0) target = $region17
    $region16: #{tpu_custom_call.1} parent=1 // pred_region
      %28 = dma.done [#allocation3], 2048
    $region17: #{tpu_custom_call.1} parent=1 // pred_fallthru
      _
    %v29 = vld [vmem:[%s0] sm:$0xff]
    %v30 = vld [vmem:[%s0 + $0x8] sm:$0x3]
    %v31 = vld [vmem:[#allocation2] sm:$0xff]
    %v32 = vld [vmem:[#allocation2 + $0x8] sm:$0xff]
    %v33 = vld [vmem:[#allocation2 + $0x10] sm:$0xff]
    %v34 = vld [vmem:[#allocation2 + $0x18] sm:$0xff]
    %v35 = vld [vmem:[#allocation2 + $0x20] sm:$0xff]
    %v36 = vld [vmem:[#allocation2 + $0x28] sm:$0xff]
    %v37 = vld [vmem:[#allocation2 + $0x30] sm:$0xff]
    %v38 = vld [vmem:[#allocation2 + $0x38] sm:$0xff]
    %v39 = vld [vmem:[#allocation2 + $0x40] sm:$0xff]
    %v40 = vld [vmem:[#allocation2 + $0x48] sm:$0xff]
    %v41 = vld [vmem:[#allocation2 + $0x50] sm:$0xff]
    %v42 = vld [vmem:[#allocation2 + $0x58] sm:$0xff]
    %v43 = vld [vmem:[#allocation2 + $0x60] sm:$0xff]
    %v44 = vld [vmem:[#allocation2 + $0x68] sm:$0xff]
    %v45 = vld [vmem:[#allocation2 + $0x70] sm:$0xff]
    %v46 = vld [vmem:[#allocation2 + $0x78] sm:$0xff]
    %47 = vmatprep.subr.mxu0 0.0
    %48 = vmatpush1.msra.mxu0 %v46
    %49 = vmatprep.subr.mxu0 0.0
    %50 = vmatpush1.msra.mxu0 %v45
    %51 = vmatprep.subr.mxu0 0.0
    %52 = vmatpush1.msra.mxu0 %v44
    %53 = vmatprep.subr.mxu0 0.0
    %54 = vmatpush1.msra.mxu0 %v43
    %55 = vmatprep.subr.mxu0 0.0
    %56 = vmatpush1.msra.mxu0 %v42
    %57 = vmatprep.subr.mxu0 0.0
    %58 = vmatpush1.msra.mxu0 %v41
    %59 = vmatprep.subr.mxu0 0.0
    %60 = vmatpush1.msra.mxu0 %v40
    %61 = vmatprep.subr.mxu0 0.0
    %62 = vmatpush1.msra.mxu0 %v39
    %63 = vmatprep.subr.mxu0 0.0
    %64 = vmatpush1.msra.mxu0 %v38
    %65 = vmatprep.subr.mxu0 0.0
    %66 = vmatpush1.msra.mxu0 %v37
    %67 = vmatprep.subr.mxu0 0.0
    %68 = vmatpush1.msra.mxu0 %v36
    %69 = vmatprep.subr.mxu0 0.0
    %70 = vmatpush1.msra.mxu0 %v35
    %71 = vmatprep.subr.mxu0 0.0
    %72 = vmatpush1.msra.mxu0 %v34
    %73 = vmatprep.subr.mxu0 0.0
    %74 = vmatpush1.msra.mxu0 %v33
    %75 = vmatprep.subr.mxu0 0.0
    %76 = vmatpush1.msra.mxu0 %v32
    %77 = vmatprep.subr.mxu0 0.0
    %78 = vmatpush1.msra.mxu0 %v31
    %79 = vmatprep.subr.mxu0 0.0
    %80 = vmatpush2.msra.mxu0 0.0
    %81 = vmatprep.subr.mxu0 0.0
    %82 = vmatpush2.msra.mxu0 0.0
    %83 = vmatprep.subr.mxu0 0.0
    %84 = vmatpush2.msra.mxu0 0.0
    %85 = vmatprep.subr.mxu0 0.0
    %86 = vmatpush2.msra.mxu0 0.0
    %87 = vmatprep.subr.mxu0 0.0
    %88 = vmatpush2.msra.mxu0 0.0
    %89 = vmatprep.subr.mxu0 0.0
    %90 = vmatpush2.msra.mxu0 0.0
    %91 = vmatprep.subr.mxu0 0.0
    %92 = vmatpush2.msra.mxu0 0.0
    %93 = vmatprep.subr.mxu0 0.0
    %94 = vmatpush2.msra.mxu0 0.0
    %95 = vmatprep.subr.mxu0 0.0
    %96 = vmatpush2.msra.mxu0 0.0
    %97 = vmatprep.subr.mxu0 0.0
    %98 = vmatpush2.msra.mxu0 0.0
    %99 = vmatprep.subr.mxu0 0.0
    %100 = vmatpush2.msra.mxu0 0.0
    %101 = vmatprep.subr.mxu0 0.0
    %102 = vmatpush2.msra.mxu0 0.0
    %103 = vmatprep.subr.mxu0 0.0
    %104 = vmatpush2.msra.mxu0 0.0
    %105 = vmatprep.subr.mxu0 0.0
    %106 = vmatpush2.msra.mxu0 0.0
    %107 = vmatprep.subr.mxu0 0.0
    %108 = vmatpush2.msra.mxu0 0.0
    %109 = vmatprep.subr.mxu0 0.0
    %110 = vmatpush2.msra.mxu0 0.0
    %111 = vmatprep.mubr.f32.mxu0 0.0
    %112 = vmatmul.mubr.f32.gmra.mxu0 %v29
    %v113 = vpop.f32.mrf.mxu0
    %v114 = vadd.f32 0.0, %v113
    %v115 = vpop.f32.mrf.mxu0
    %116 = vmatprep.mubr.f32.mxu0 0.0
    %117 = vmatmul.mubr.f32.gmra.mxu0 %v30
    %v118 = vpop.f32.mrf.mxu0
    %v119 = vadd.f32 0.0, %v118
    %v120 = vpop.f32.mrf.mxu0
    %121 = vdwg.mxu0
    %v122 = vld [vmem:[%s2] sm:$0xff]
    %v123 = vld [vmem:[%s2 + $0x8] sm:$0xff]
    %v124 = vld [vmem:[%s2 + $0x10] sm:$0xff]
    %v125 = vld [vmem:[%s2 + $0x18] sm:$0xff]
    %v126 = vld [vmem:[%s2 + $0x20] sm:$0xff]
    %v127 = vld [vmem:[%s2 + $0x28] sm:$0xff]
    %v128 = vld [vmem:[%s2 + $0x30] sm:$0xff]
    %v129 = vld [vmem:[%s2 + $0x38] sm:$0xff]
    %vm130 = vcmask 80896
    %v132 = vsel %vm130, %v122, 0
    %v135 = vsel %vm130, %v123, 0
    %v138 = vsel %vm130, %v124, 0
    %v141 = vsel %vm130, %v125, 0
    %v144 = vsel %vm130, %v126, 0
    %v147 = vsel %vm130, %v127, 0
    %v150 = vsel %vm130, %v128, 0
    %v153 = vsel %vm130, %v129, 0
    %vm155 = vcmask 1041408
    %v157 = vsel %vm155, %v119, 0
    %159 = vmatprep.subr.mxu0 0.0
    %160 = vmatpush1.msra.mxu0 0.0
    %161 = vmatprep.subr.mxu0 0.0
    %162 = vmatpush1.msra.mxu0 0.0
    %163 = vmatprep.subr.mxu0 0.0
    %164 = vmatpush1.msra.mxu0 0.0
    %165 = vmatprep.subr.mxu0 0.0
    %166 = vmatpush1.msra.mxu0 0.0
    %167 = vmatprep.subr.mxu0 0.0
    %168 = vmatpush1.msra.mxu0 0.0
    %169 = vmatprep.subr.mxu0 0.0
    %170 = vmatpush1.msra.mxu0 0.0
    %171 = vmatprep.subr.mxu0 0.0
    %172 = vmatpush1.msra.mxu0 0.0
    %173 = vmatprep.subr.mxu0 0.0
    %174 = vmatpush1.msra.mxu0 0.0
    %175 = vmatprep.subr.mxu0 0.0
    %176 = vmatpush1.msra.mxu0 0.0
    %177 = vmatprep.subr.mxu0 0.0
    %178 = vmatpush1.msra.mxu0 0.0
    %179 = vmatprep.subr.mxu0 0.0
    %180 = vmatpush1.msra.mxu0 0.0
    %181 = vmatprep.subr.mxu0 0.0
    %182 = vmatpush1.msra.mxu0 0.0
    %183 = vmatprep.subr.mxu0 0.0
    %184 = vmatpush1.msra.mxu0 0.0
    %185 = vmatprep.subr.mxu0 0.0
    %186 = vmatpush1.msra.mxu0 0.0
    %187 = vmatprep.subr.mxu0 0.0
    %188 = vmatpush1.msra.mxu0 %v157
    %189 = vmatprep.subr.mxu0 0.0
    %190 = vmatpush1.msra.mxu0 %v114
    %191 = vmatprep.subr.mxu0 0.0
    %192 = vmatpush2.msra.mxu0 0.0
    %193 = vmatprep.subr.mxu0 0.0
    %194 = vmatpush2.msra.mxu0 0.0
    %195 = vmatprep.subr.mxu0 0.0
    %196 = vmatpush2.msra.mxu0 0.0
    %197 = vmatprep.subr.mxu0 0.0
    %198 = vmatpush2.msra.mxu0 0.0
    %199 = vmatprep.subr.mxu0 0.0
    %200 = vmatpush2.msra.mxu0 0.0
    %201 = vmatprep.subr.mxu0 0.0
    %202 = vmatpush2.msra.mxu0 0.0
    %203 = vmatprep.subr.mxu0 0.0
    %204 = vmatpush2.msra.mxu0 0.0
    %205 = vmatprep.subr.mxu0 0.0
    %206 = vmatpush2.msra.mxu0 0.0
    %207 = vmatprep.subr.mxu0 0.0
    %208 = vmatpush2.msra.mxu0 0.0
    %209 = vmatprep.subr.mxu0 0.0
    %210 = vmatpush2.msra.mxu0 0.0
    %211 = vmatprep.subr.mxu0 0.0
    %212 = vmatpush2.msra.mxu0 0.0
    %213 = vmatprep.subr.mxu0 0.0
    %214 = vmatpush2.msra.mxu0 0.0
    %215 = vmatprep.subr.mxu0 0.0
    %216 = vmatpush2.msra.mxu0 0.0
    %217 = vmatprep.subr.mxu0 0.0
    %218 = vmatpush2.msra.mxu0 0.0
    %219 = vmatprep.subr.mxu0 0.0
    %220 = vmatpush2.msra.mxu0 0.0
    %221 = vmatprep.subr.mxu0 0.0
    %222 = vmatpush2.msra.mxu0 0.0
    %223 = vmatprep.mubr.f32.mxu0 0.0
    %224 = vmatmul.mubr.f32.gmra.mxu0 %v132
    %v225 = vpop.f32.mrf.mxu0
    %v226 = vadd.f32 0.0, %v225
    %v227 = vpop.f32.mrf.mxu0
    %228 = vmatprep.mubr.f32.mxu0 0.0
    %229 = vmatmul.mubr.f32.gmra.mxu0 %v135
    %v230 = vpop.f32.mrf.mxu0
    %v231 = vadd.f32 0.0, %v230
    %v232 = vpop.f32.mrf.mxu0
    %233 = vmatprep.mubr.f32.mxu0 0.0
    %234 = vmatmul.mubr.f32.gmra.mxu0 %v138
    %v235 = vpop.f32.mrf.mxu0
    %v236 = vadd.f32 0.0, %v235
    %v237 = vpop.f32.mrf.mxu0
    %238 = vmatprep.mubr.f32.mxu0 0.0
    %239 = vmatmul.mubr.f32.gmra.mxu0 %v141
    %v240 = vpop.f32.mrf.mxu0
    %v241 = vadd.f32 0.0, %v240
    %v242 = vpop.f32.mrf.mxu0
    %243 = vmatprep.mubr.f32.mxu0 0.0
    %244 = vmatmul.mubr.f32.gmra.mxu0 %v144
    %v245 = vpop.f32.mrf.mxu0
    %v246 = vadd.f32 0.0, %v245
    %v247 = vpop.f32.mrf.mxu0
    %248 = vmatprep.mubr.f32.mxu0 0.0
    %249 = vmatmul.mubr.f32.gmra.mxu0 %v147
    %v250 = vpop.f32.mrf.mxu0
    %v251 = vadd.f32 0.0, %v250
    %v252 = vpop.f32.mrf.mxu0
    %253 = vmatprep.mubr.f32.mxu0 0.0
    %254 = vmatmul.mubr.f32.gmra.mxu0 %v150
    %v255 = vpop.f32.mrf.mxu0
    %v256 = vadd.f32 0.0, %v255
    %v257 = vpop.f32.mrf.mxu0
    %258 = vmatprep.mubr.f32.mxu0 0.0
    %259 = vmatmul.mubr.f32.gmra.mxu0 %v153
    %v260 = vpop.f32.mrf.mxu0
    %v261 = vadd.f32 0.0, %v260
    %v262 = vpop.f32.mrf.mxu0
    %263 = vdwg.mxu0
    %264 = vst [vmem:[#allocation5] sm:$0xff] %v226
    %265 = vst [vmem:[#allocation5 + $0x8] sm:$0xff] %v231
    %266 = vst [vmem:[#allocation5 + $0x10] sm:$0xff] %v236
    %267 = vst [vmem:[#allocation5 + $0x18] sm:$0xff] %v241
    %268 = vst [vmem:[#allocation5 + $0x20] sm:$0xff] %v246
    %269 = vst [vmem:[#allocation5 + $0x28] sm:$0xff] %v251
    %270 = vst [vmem:[#allocation5 + $0x30] sm:$0xff] %v256
    %271 = vst [vmem:[#allocation5 + $0x38] sm:$0xff] %v261
    // Predicated region
    $region18: #{tpu_custom_call.1} parent=1 // pred_check
      _
    $region19: #{tpu_custom_call.1} parent=1 // pred_check_branch
      %273 = sbr.rel (0) target = $region21
    $region20: #{tpu_custom_call.1} parent=1 // pred_region
      %s275 = ssub.s32 1024, 1024
      %276 = vsyncadd [#allocation4], %s275
      %s277 = sshll.u32 [#allocation5], 4
      %s278 = int_to_ptr.vmem [resolvable:$true] %s277
      %283 = dma.vmem_to_hbm [thread:$0]  %s278, 1024, %s3, [#allocation4], 128, 128, 8
    $region21: #{tpu_custom_call.1} parent=1 // pred_fallthru
      _
    // Predicated region
    $region22: #{tpu_custom_call.1} parent=1 // pred_check
      _
    $region23: #{tpu_custom_call.1} parent=1 // pred_check_branch
      %285 = sbr.rel (0) target = $region25
    $region24: #{tpu_custom_call.1} parent=1 // pred_region
      %286 = dma.done [#allocation4], 1024
    $region25: #{tpu_custom_call.1} parent=1 // pred_fallthru
      _
    %287 = vsyncpa [#allocation3], 1
    %288 = vsyncpa [#allocation4], 1

</llo_original>
